<compile_context>
chip_gen: v7x
topology: tpu7x:2x2x1
jax: 0.10.0
libtpu: 0.0.40
codegen_flags: <defaults>
</compile_context>

<pallas_src>
import jax
import jax.numpy as jnp
from jax.experimental import pallas as pl
from jax.experimental.pallas import tpu as pltpu


def ffn_kernel(x_ref, w1_ref, b1_ref, w2_ref, b2_ref, o_ref, acc_ref, xb_ref):
    j = pl.program_id(1)

    @pl.when(j == 0)
    def _():
        # Cast the (tm, C) activation block to bf16 once per row block, and fold
        # the output bias b2 into the accumulator init (removes a full VPU pass
        # over the output tile at the reduction tail).
        xb_ref[...] = x_ref[...].astype(jnp.bfloat16)
        acc_ref[...] = jnp.broadcast_to(b2_ref[...], acc_ref.shape)

    # (tm, C) @ (C, th) -> slice of the hidden layer; bias + ReLU in f32.
    h = jnp.dot(xb_ref[...], w1_ref[...], preferred_element_type=jnp.float32)
    h = jnp.maximum(h + b1_ref[...], 0.0)

    # (tm, th) @ (th, C) -> partial contribution to the (tm, C) output.
    acc_ref[...] += jnp.dot(h.astype(w2_ref.dtype), w2_ref[...],
                            preferred_element_type=jnp.float32)

    @pl.when(j == pl.num_programs(1) - 1)
    def _():
        o_ref[...] = acc_ref[...].astype(o_ref.dtype)


def _default_vmem_limit():
    # ~75% of physical VMEM per TensorCore: 48 MiB on v7x, 96 MiB on v5e/v6e.
    try:
        cap = pltpu.get_tpu_info().vmem_capacity_bytes
        return int(cap) * 3 // 4
    except Exception:
        return 48 * 1024 * 1024   # safe on every generation


def feed_forward(x, w1, b1, w2, b2, *, tm=None, th=None):
    """x: (B, T, C); w1: (C, H); b1: (1, H); w2: (H, C); b2: (1, C)."""
    B, T, C = x.shape
    H = w1.shape[1]
    M = B * T

    if tm is None:
        # Large row tile so the streamed W1/W2 slabs are amortized over many
        # rows (MXU-bound), but keep at least 2 row blocks for v7x megacore.
        tm = 512
        while tm > 16 and M % tm != 0:
            tm //= 2
        tm = min(tm, M)
        if M // tm < 2 and tm >= 32 and (M % (tm // 2) == 0):
            tm //= 2
    if th is None:
        th = min(512, H)
        while th > 128 and H % th != 0:
            th -= 128

    assert M % tm == 0, "B*T must be divisible by tm"
    assert tm % 16 == 0, "tm must be a multiple of 16 (bf16 vreg packing)"
    assert H % th == 0 and th % 128 == 0, "hidden tile must be a lane-dense divisor of 4*C"
    assert C % 128 == 0, "n_embd must be a multiple of 128 for lane-dense tiles"

    out_dtype = x.dtype
    xf = x.reshape(M, C)   # bf16 cast happens inside the kernel (no extra HBM pass)

    # Recommended: store the FFN parameters in these dtypes so the casts below
    # are no-ops; otherwise cache the cast outside the per-call path.
    w1 = w1.astype(jnp.bfloat16)
    w2 = w2.astype(jnp.bfloat16)
    b1 = b1.astype(jnp.float32)
    b2 = b2.astype(jnp.float32)

    out = pl.pallas_call(
        ffn_kernel,
        out_shape=jax.ShapeDtypeStruct((M, C), out_dtype),
        grid=(M // tm, H // th),
        in_specs=[
            pl.BlockSpec((tm, C), lambda i, j: (i, 0)),    # x row block (f32)
            pl.BlockSpec((C, th), lambda i, j: (0, j)),    # W1 column slab (bf16)
            pl.BlockSpec((1, th), lambda i, j: (0, j)),    # b1 slab
            pl.BlockSpec((th, C), lambda i, j: (j, 0)),    # W2 row slab (bf16)
            pl.BlockSpec((1, C), lambda i, j: (0, 0)),     # b2
        ],
        out_specs=pl.BlockSpec((tm, C), lambda i, j: (i, 0)),
        scratch_shapes=[
            pltpu.VMEM((tm, C), jnp.float32),    # output accumulator (init = b2)
            pltpu.VMEM((tm, C), jnp.bfloat16),   # bf16 copy of the x row block
        ],
        compiler_params=pltpu.CompilerParams(
            dimension_semantics=("parallel", "arbitrary"),
            vmem_limit_bytes=_default_vmem_limit()),
    )(xf, w1, b1, w2, b2)
    return out.reshape(B, T, C)


def reference_ffn(x, w1, b1, w2, b2):
    """Pure-JAX replica of the PyTorch forward (eval mode, f32)."""
    h = jnp.maximum(x @ w1 + b1[0], 0.0)
    return h @ w2 + b2[0]


if __name__ == "__main__":
    # Small config consistent with the module: Linear(C, 4C) -> ReLU -> Linear(4C, C).
    B, T = 2, 32
    n_embd = 128            # small but lane-dense (multiple of 128)
    hidden = 4 * n_embd     # 512

    key = jax.random.PRNGKey(0)
    kx, k1, kb1, k2, kb2 = jax.random.split(key, 5)

    x = jax.random.normal(kx, (B, T, n_embd), jnp.float32)
    # PyTorch nn.Linear(in, out).weight is (out, in); stored here as weight.T.
    w1 = jax.random.normal(k1, (n_embd, hidden), jnp.float32) * 0.05
    b1 = jax.random.normal(kb1, (1, hidden), jnp.float32) * 0.05
    w2 = jax.random.normal(k2, (hidden, n_embd), jnp.float32) * 0.05
    b2 = jax.random.normal(kb2, (1, n_embd), jnp.float32) * 0.05

    # tm=32 (multiple of 16), th=256 -> grid (2, 2): exercises both the parallel
    # row axis and the hidden-reduction accumulator path.
    out = jax.block_until_ready(feed_forward(x, w1, b1, w2, b2, tm=32, th=256))
    ref = reference_ffn(x, w1, b1, w2, b2)

    assert out.shape == (B, T, n_embd)
    # bf16 matmul inputs + f32 accumulation => loose-ish tolerance vs f32 reference.
    assert jnp.allclose(out, ref, atol=2e-2, rtol=2e-2), "mismatch vs reference"

    print("KERNEL_OK")
</pallas_src>

<mosaic_0001>
module attributes {stable_mosaic.version = 11 : i64} {
  func.func @ffn_kernel(%arg0: i32, %arg1: i32, %arg2: memref<32x128xf32, #tpu.memory_space<vmem>>, %arg3: memref<128x256xbf16, #tpu.memory_space<vmem>>, %arg4: memref<1x256xf32, #tpu.memory_space<vmem>>, %arg5: memref<256x128xbf16, #tpu.memory_space<vmem>>, %arg6: memref<1x128xf32, #tpu.memory_space<vmem>>, %arg7: memref<32x128xf32, #tpu.memory_space<vmem>>, %arg8: memref<32x128xf32, #tpu.memory_space<vmem>>, %arg9: memref<32x128xbf16, #tpu.memory_space<vmem>>) attributes {dimension_semantics = [#tpu.dimension_semantics<parallel>, #tpu.dimension_semantics<arbitrary>], iteration_bounds = array<i64: 2, 2>, scalar_prefetch = 0 : i64, scratch_operands = 2 : i64, tpu.core_type = #tpu.core_type<tc>, window_params = [{transform_indices = @transform_0, window_bounds = array<i64: 32, 128>}, {transform_indices = @transform_1, window_bounds = array<i64: 128, 256>}, {transform_indices = @transform_2, window_bounds = array<i64: 1, 256>}, {transform_indices = @transform_3, window_bounds = array<i64: 256, 128>}, {pipeline_mode = #tpu.pipeline_mode<synchronous>, transform_indices = @transform_4, window_bounds = array<i64: 1, 128>}, {transform_indices = @transform_5, window_bounds = array<i64: 32, 128>}]} {
    %c0_i32 = arith.constant 0 : i32
    %0 = arith.cmpi eq, %arg1, %c0_i32 : i32
    %1 = arith.extui %0 : i1 to i32
    %c0_i32_0 = arith.constant 0 : i32
    %2 = arith.cmpi ne, %1, %c0_i32_0 : i32
    scf.if %2 {
      %c0_15 = arith.constant 0 : index
      %c0_16 = arith.constant 0 : index
      %20 = vector.load %arg2[%c0_15, %c0_16] : memref<32x128xf32, #tpu.memory_space<vmem>>, vector<32x128xf32>
      %21 = arith.truncf %20 : vector<32x128xf32> to vector<32x128xbf16>
      %c0_17 = arith.constant 0 : index
      %c0_18 = arith.constant 0 : index
      %22 = vector.load %arg9[%c0_17, %c0_18] : memref<32x128xbf16, #tpu.memory_space<vmem>>, vector<32x128xbf16>
      tpu.vector_store %arg9[%c0_17, %c0_18], %21 {strides = array<i32>} : memref<32x128xbf16, #tpu.memory_space<vmem>>, vector<32x128xbf16>,
      %c0_19 = arith.constant 0 : index
      %c0_20 = arith.constant 0 : index
      %23 = vector.load %arg6[%c0_19, %c0_20] : memref<1x128xf32, #tpu.memory_space<vmem>>, vector<1x128xf32>
      %24 = vector.shape_cast %23 : vector<1x128xf32> to vector<1x128xf32>
      %25 = vector.broadcast %24 : vector<1x128xf32> to vector<32x128xf32>
      %c0_21 = arith.constant 0 : index
      %c0_22 = arith.constant 0 : index
      %26 = vector.load %arg8[%c0_21, %c0_22] : memref<32x128xf32, #tpu.memory_space<vmem>>, vector<32x128xf32>
      tpu.vector_store %arg8[%c0_21, %c0_22], %25 {strides = array<i32>} : memref<32x128xf32, #tpu.memory_space<vmem>>, vector<32x128xf32>,
    } else {
    }
    %c0 = arith.constant 0 : index
    %c0_1 = arith.constant 0 : index
    %3 = vector.load %arg9[%c0, %c0_1] : memref<32x128xbf16, #tpu.memory_space<vmem>>, vector<32x128xbf16>
    %c0_2 = arith.constant 0 : index
    %c0_3 = arith.constant 0 : index
    %4 = vector.load %arg3[%c0_2, %c0_3] : memref<128x256xbf16, #tpu.memory_space<vmem>>, vector<128x256xbf16>
    %cst = arith.constant dense<0.000000e+00> : vector<32x256xf32>
    %5 = tpu.matmul %3, %4, %cst {dimension_numbers = #tpu.dot_dimension_numbers<[1], [0], [0], [1], [0, 0, 1, 1], [], []>} : vector<32x128xbf16>, vector<128x256xbf16>, vector<32x256xf32> -> vector<32x256xf32>
    %c0_4 = arith.constant 0 : index
    %c0_5 = arith.constant 0 : index
    %6 = vector.load %arg4[%c0_4, %c0_5] : memref<1x256xf32, #tpu.memory_space<vmem>>, vector<1x256xf32>
    %7 = vector.broadcast %6 : vector<1x256xf32> to vector<32x256xf32>
    %8 = arith.addf %5, %7 : vector<32x256xf32>
    %cst_6 = arith.constant 0.000000e+00 : f32
    %9 = vector.broadcast %cst_6 : f32 to vector<32x256xf32>
    %10 = arith.maximumf %8, %9 : vector<32x256xf32>
    %c0_7 = arith.constant 0 : index
    %c0_8 = arith.constant 0 : index
    %11 = vector.load %arg8[%c0_7, %c0_8] : memref<32x128xf32, #tpu.memory_space<vmem>>, vector<32x128xf32>
    %12 = arith.truncf %10 : vector<32x256xf32> to vector<32x256xbf16>
    %c0_9 = arith.constant 0 : index
    %c0_10 = arith.constant 0 : index
    %13 = vector.load %arg5[%c0_9, %c0_10] : memref<256x128xbf16, #tpu.memory_space<vmem>>, vector<256x128xbf16>
    %cst_11 = arith.constant dense<0.000000e+00> : vector<32x128xf32>
    %14 = tpu.matmul %12, %13, %cst_11 {dimension_numbers = #tpu.dot_dimension_numbers<[1], [0], [0], [1], [0, 0, 1, 1], [], []>} : vector<32x256xbf16>, vector<256x128xbf16>, vector<32x128xf32> -> vector<32x128xf32>
    %15 = arith.addf %11, %14 : vector<32x128xf32>
    %c0_12 = arith.constant 0 : index
    %c0_13 = arith.constant 0 : index
    %16 = vector.load %arg8[%c0_12, %c0_13] : memref<32x128xf32, #tpu.memory_space<vmem>>, vector<32x128xf32>
    tpu.vector_store %arg8[%c0_12, %c0_13], %15 {strides = array<i32>} : memref<32x128xf32, #tpu.memory_space<vmem>>, vector<32x128xf32>,
    %c1_i32 = arith.constant 1 : i32
    %17 = arith.cmpi eq, %arg1, %c1_i32 : i32
    %18 = arith.extui %17 : i1 to i32
    %c0_i32_14 = arith.constant 0 : i32
    %19 = arith.cmpi ne, %18, %c0_i32_14 : i32
    scf.if %19 {
      %c0_15 = arith.constant 0 : index
      %c0_16 = arith.constant 0 : index
      %20 = vector.load %arg8[%c0_15, %c0_16] : memref<32x128xf32, #tpu.memory_space<vmem>>, vector<32x128xf32>
      %c0_17 = arith.constant 0 : index
      %c0_18 = arith.constant 0 : index
      %21 = vector.load %arg7[%c0_17, %c0_18] : memref<32x128xf32, #tpu.memory_space<vmem>>, vector<32x128xf32>
      tpu.vector_store %arg7[%c0_17, %c0_18], %20 {strides = array<i32>} : memref<32x128xf32, #tpu.memory_space<vmem>>, vector<32x128xf32>,
    } else {
    }
    return
  }
  func.func @transform_0(%arg0: i32, %arg1: i32) -> (i32, i32) {
    %c0_i32 = arith.constant 0 : i32
    %c0_i32_0 = arith.constant 0 : i32
    return %arg0, %c0_i32 : i32, i32
  }
  func.func @transform_1(%arg0: i32, %arg1: i32) -> (i32, i32) {
    %c0_i32 = arith.constant 0 : i32
    %c0_i32_0 = arith.constant 0 : i32
    return %c0_i32, %arg1 : i32, i32
  }
  func.func @transform_2(%arg0: i32, %arg1: i32) -> (i32, i32) {
    %c0_i32 = arith.constant 0 : i32
    %c0_i32_0 = arith.constant 0 : i32
    return %c0_i32, %arg1 : i32, i32
  }
  func.func @transform_3(%arg0: i32, %arg1: i32) -> (i32, i32) {
    %c0_i32 = arith.constant 0 : i32
    %c0_i32_0 = arith.constant 0 : i32
    return %arg1, %c0_i32 : i32, i32
  }
  func.func @transform_4(%arg0: i32, %arg1: i32) -> (i32, i32) {
    %c0_i32 = arith.constant 0 : i32
    %c0_i32_0 = arith.constant 0 : i32
    %c0_i32_1 = arith.constant 0 : i32
    return %c0_i32, %c0_i32_0 : i32, i32
  }
  func.func @transform_5(%arg0: i32, %arg1: i32) -> (i32, i32) {
    %c0_i32 = arith.constant 0 : i32
    %c0_i32_0 = arith.constant 0 : i32
    return %arg0, %c0_i32 : i32, i32
  }
}

</mosaic_0001>

<llo_original>
// kernel: tpu_custom_call.1
$region0: #{tpu_custom_call.1}
  #allocation0 [shape = 'u32[]', space=smem, size = 0x4, offset = 0x4, fixed_abs, tag = 'smem constant byte address 0x4 - core index']
  #allocation1 [shape = 'u32[144,128]{1,0:T(1,128)}', space=vmem, size = 0x12000, scoped, tag = 'internal scratch']
  #allocation2 [shape = 'f32[32,128]{1,0:T(8,128)}', space=vmem, size = 0x4000, scoped, tag = 'scratch operand']
  #allocation3 [shape = 'bf16[32,128]{1,0:T(16,128)(2,1)}', space=vmem, size = 0x2000, scoped, tag = 'scratch operand']
  %s0 = inlined_call_operand.hbm [shape: f32[64,128], index: 0, kind: input, shape index: {}]
  %s1 = inlined_call_operand.hbm [shape: bf16[128,512], index: 1, kind: input, shape index: {}]
  %s2 = inlined_call_operand.vmem [shape: f32[1,512], index: 2, kind: input, shape index: {}]
  %s3 = inlined_call_operand.hbm [shape: bf16[512,128], index: 3, kind: input, shape index: {}]
  %s4 = inlined_call_operand.vmem [shape: f32[1,128], index: 4, kind: input, shape index: {}]
  %s5 = inlined_call_operand.hbm [shape: f32[64,128], index: 5, kind: output, shape index: {}]
  %s6 = sld [smem:[#allocation0]]
  $region73: #{tpu_custom_call.1} parent=0
    _
  %s8 = ssub.s32 1, %s6
  %s9 = scalar_select 0, %s8, %s6
  $region1: #{tpu_custom_call.1} parent=0
    #allocation4 [shape = 'u8[32768]{0}', space=vmem, size = 0x8000, scoped, tag = 'input window, operand 0']
    #allocation5 [shape = 's32[2]{0}', space=sflag, size = 0x8, scoped, tag = 'scoped memory for tpu_custom_call.1']
    #allocation6 [shape = 's32[2]{0}', space=sflag, size = 0x8, scoped, tag = 'scoped memory for tpu_custom_call.1']
    #allocation7 [shape = 'u8[131072]{0}', space=vmem, size = 0x20000, scoped, tag = 'input window, operand 1']
    #allocation8 [shape = 's32[2]{0}', space=sflag, size = 0x8, scoped, tag = 'scoped memory for tpu_custom_call.1']
    #allocation9 [shape = 'u8[131072]{0}', space=vmem, size = 0x20000, scoped, tag = 'input window, operand 3']
    #allocation10 [shape = 'u8[32768]{0}', space=vmem, size = 0x8000, scoped, tag = 'output window, operand 0']
    %10 = vsyncpa [#allocation5], 0
    %s11 = scalar_lea.sflag [#allocation5], 1
    %12 = vsyncpa %s11, 0
    %13 = vsyncpa [#allocation8], 0
    %s14 = scalar_lea.sflag [#allocation8], 1
    %15 = vsyncpa %s14, 0
    %16 = vsyncpa [#allocation6], 0
    %s17 = scalar_lea.sflag [#allocation6], 1
    %18 = vsyncpa %s17, 0
    loop: start=0, step=1, limit=6
    $region2: #{tpu_custom_call.1} parent=1 // loop_pre_header
      _
    $region3: #{tpu_custom_call.1} parent=1 // loop_header
      %s20 = sphi 0, %s24
      %p21 = scmp.ge.s32.totalorder %s20, 6
      %s27 = sphi 0, %s39
      %s28 = sphi 0, %s35
      %s29 = sphi 0, %s27
      %s30 = sphi 0, %s28
      %s31 = sphi 0, %s29
      %s32 = sphi 0, %s30
      %s42 = sphi 0, %s44
      %s45 = sphi 0, %s42
      %s46 = sphi 0, %s45
      %s62 = sphi 0, %s46
      %s68 = sphi 0, %s70
      %s71 = sphi 0, %s68
      %s72 = sphi 0, %s71
      %s88 = sphi 0, %s72
      %s94 = sphi 0, %s96
      %s97 = sphi 0, %s94
      %s98 = sphi 0, %s97
      %s114 = sphi 0, %s98
      %s120 = sphi 0, %s122
      %s123 = sphi 0, %s120
      %s124 = sphi 0, %s123
      %s140 = sphi 0, %s124
      %s144 = sphi 0, %s144
      %s146 = sphi 0, %s144
      %s147 = sphi 0, %s146
      %s161 = sphi 0, %s147
      %s167 = sphi 0, %s169
      %s170 = sphi 0, %s167
      %s171 = sphi 0, %s170
      %s187 = sphi 0, %s171
    $region4: #{tpu_custom_call.1} parent=1 // loop_header_branch
      %23 = sbr.rel (%p21) target = $region8
    $region5: #{tpu_custom_call.1} parent=1 // loop_body
      %s25 = ssub.s32 %s20, 1
      %s26 = ssub.s32 %s20, 2
      %s33 = sadd.s32 1, %s28
      %p34 = scmp.ge.s32.totalorder %s33, 2
      %s35 = scalar_select %p34, 0, %s33
      %s36 = sadd.s32 1, %s27
      %s37 = scalar_select %p34, %s36, %s27
      %p38 = scmp.ge.s32.totalorder %s37, 2
      %s39 = scalar_select %p38, 0, %s37
      %s40 = ssub.s32 %s27, %s39
      %p41 = scmp.eq.s32.totalorder %s40, 0
      %s43 = sadd.s32 %s42, 1
      %s44 = scalar_select %p41, %s42, %s43
      %p47 = pneg %p41
      %p48 = scmp.eq.s32.totalorder %s20, 3
      %p49 = por %p47, %p48
      %p50 = scmp.ne.s32.totalorder %s42, %s45
      %p51 = scmp.eq.s32.totalorder %s20, 0
      %p52 = por %p50, %p51
      %p53 = scmp.ne.s32.totalorder %s42, %s45
      %p54 = scmp.eq.s32.totalorder %s25, 3
      %p55 = por %p53, %p54
      %p56 = scmp.ne.s32.totalorder %s45, %s46
      %p57 = scmp.eq.s32.totalorder %s25, 0
      %p58 = por %p56, %p57
      %p59 = scmp.ne.s32.totalorder %s45, %s46
      %p60 = scmp.eq.s32.totalorder %s26, 3
      %p61 = por %p59, %p60
      %p63 = scmp.ne.s32.totalorder %s46, %s62
      %p64 = scmp.eq.s32.totalorder %s26, 0
      %p65 = por %p63, %p64
      %s66 = ssub.s32 %s28, %s35
      %p67 = scmp.eq.s32.totalorder %s66, 0
      %s69 = sadd.s32 %s68, 1
      %s70 = scalar_select %p67, %s68, %s69
      %p73 = pneg %p67
      %p74 = scmp.eq.s32.totalorder %s20, 3
      %p75 = por %p73, %p74
      %p76 = scmp.ne.s32.totalorder %s68, %s71
      %p77 = scmp.eq.s32.totalorder %s20, 0
      %p78 = por %p76, %p77
      %p79 = scmp.ne.s32.totalorder %s68, %s71
      %p80 = scmp.eq.s32.totalorder %s25, 3
      %p81 = por %p79, %p80
      %p82 = scmp.ne.s32.totalorder %s71, %s72
      %p83 = scmp.eq.s32.totalorder %s25, 0
      %p84 = por %p82, %p83
      %p85 = scmp.ne.s32.totalorder %s71, %s72
      %p86 = scmp.eq.s32.totalorder %s26, 3
      %p87 = por %p85, %p86
      %p89 = scmp.ne.s32.totalorder %s72, %s88
      %p90 = scmp.eq.s32.totalorder %s26, 0
      %p91 = por %p89, %p90
      %s92 = ssub.s32 %s28, %s35
      %p93 = scmp.eq.s32.totalorder %s92, 0
      %s95 = sadd.s32 %s94, 1
      %s96 = scalar_select %p93, %s94, %s95
      %p99 = pneg %p93
      %p100 = scmp.eq.s32.totalorder %s20, 3
      %p101 = por %p99, %p100
      %p102 = scmp.ne.s32.totalorder %s94, %s97
      %p103 = scmp.eq.s32.totalorder %s20, 0
      %p104 = por %p102, %p103
      %p105 = scmp.ne.s32.totalorder %s94, %s97
      %p106 = scmp.eq.s32.totalorder %s25, 3
      %p107 = por %p105, %p106
      %p108 = scmp.ne.s32.totalorder %s97, %s98
      %p109 = scmp.eq.s32.totalorder %s25, 0
      %p110 = por %p108, %p109
      %p111 = scmp.ne.s32.totalorder %s97, %s98
      %p112 = scmp.eq.s32.totalorder %s26, 3
      %p113 = por %p111, %p112
      %p115 = scmp.ne.s32.totalorder %s98, %s114
      %p116 = scmp.eq.s32.totalorder %s26, 0
      %p117 = por %p115, %p116
      %s118 = ssub.s32 %s28, %s35
      %p119 = scmp.eq.s32.totalorder %s118, 0
      %s121 = sadd.s32 %s120, 1
      %s122 = scalar_select %p119, %s120, %s121
      %p125 = pneg %p119
      %p126 = scmp.eq.s32.totalorder %s20, 3
      %p127 = por %p125, %p126
      %p128 = scmp.ne.s32.totalorder %s120, %s123
      %p129 = scmp.eq.s32.totalorder %s20, 0
      %p130 = por %p128, %p129
      %p131 = scmp.ne.s32.totalorder %s120, %s123
      %p132 = scmp.eq.s32.totalorder %s25, 3
      %p133 = por %p131, %p132
      %p134 = scmp.ne.s32.totalorder %s123, %s124
      %p135 = scmp.eq.s32.totalorder %s25, 0
      %p136 = por %p134, %p135
      %p137 = scmp.ne.s32.totalorder %s123, %s124
      %p138 = scmp.eq.s32.totalorder %s26, 3
      %p139 = por %p137, %p138
      %p141 = scmp.ne.s32.totalorder %s124, %s140
      %p142 = scmp.eq.s32.totalorder %s26, 0
      %p143 = por %p141, %p142
      %s145 = sadd.s32 %s144, 1
      %p148 = scmp.eq.s32.totalorder %s20, 3
      %p149 = scmp.ne.s32.totalorder %s144, %s146
      %p150 = scmp.eq.s32.totalorder %s20, 0
      %p151 = por %p149, %p150
      %p152 = scmp.ne.s32.totalorder %s144, %s146
      %p153 = scmp.eq.s32.totalorder %s25, 3
      %p154 = por %p152, %p153
      %p155 = scmp.ne.s32.totalorder %s146, %s147
      %p156 = scmp.eq.s32.totalorder %s25, 0
      %p157 = por %p155, %p156
      %p158 = scmp.ne.s32.totalorder %s146, %s147
      %p159 = scmp.eq.s32.totalorder %s26, 3
      %p160 = por %p158, %p159
      %p162 = scmp.ne.s32.totalorder %s147, %s161
      %p163 = scmp.eq.s32.totalorder %s26, 0
      %p164 = por %p162, %p163
      %s165 = ssub.s32 %s27, %s39
      %p166 = scmp.eq.s32.totalorder %s165, 0
      %s168 = sadd.s32 %s167, 1
      %s169 = scalar_select %p166, %s167, %s168
      %p172 = pneg %p166
      %p173 = scmp.eq.s32.totalorder %s20, 3
      %p174 = por %p172, %p173
      %p175 = scmp.ne.s32.totalorder %s167, %s170
      %p176 = scmp.eq.s32.totalorder %s20, 0
      %p177 = por %p175, %p176
      %p178 = scmp.ne.s32.totalorder %s167, %s170
      %p179 = scmp.eq.s32.totalorder %s25, 3
      %p180 = por %p178, %p179
      %p181 = scmp.ne.s32.totalorder %s170, %s171
      %p182 = scmp.eq.s32.totalorder %s25, 0
      %p183 = por %p181, %p182
      %p184 = scmp.ne.s32.totalorder %s170, %s171
      %p185 = scmp.eq.s32.totalorder %s26, 3
      %p186 = por %p184, %p185
      %p188 = scmp.ne.s32.totalorder %s171, %s187
      %p189 = scmp.eq.s32.totalorder %s26, 0
      %p190 = por %p188, %p189
      %p191 = scmp.le.s32.totalorder 1, %s20
      %p192 = scmp.lt.s32.totalorder %s20, 5
      %p193 = pnand %p191, %p192
      %p194 = pneg %p193
      // Predicated region
      $region9: #{tpu_custom_call.1} parent=5 // pred_check
        _
      $region10: #{tpu_custom_call.1} parent=5 // pred_check_branch
        %196 = sbr.rel (%p193) target = $region12
      $region11: #{tpu_custom_call.1} parent=5 // pred_region
        %s197 = ssub.s32 %s20, 1
        // Predicated region
        $region13: #{tpu_custom_call.1} parent=11 // pred_check
          %p198 = pneg %p157
        $region14: #{tpu_custom_call.1} parent=11 // pred_check_branch
          %200 = sbr.rel (%p198) target = $region16
        $region15: #{tpu_custom_call.1} parent=11 // pred_region
          _
        $region16: #{tpu_custom_call.1} parent=11 // pred_fallthru
          _
      $region12: #{tpu_custom_call.1} parent=5 // pred_fallthru
        _
      %p201 = scmp.lt.s32.totalorder %s20, 4
      // Predicated region
      $region17: #{tpu_custom_call.1} parent=5 // pred_check
        %p202 = pneg %p201
      $region18: #{tpu_custom_call.1} parent=5 // pred_check_branch
        %204 = sbr.rel (%p202) target = $region20
      $region19: #{tpu_custom_call.1} parent=5 // pred_region
        // Predicated region
        $region21: #{tpu_custom_call.1} parent=19 // pred_check
          %p205 = pneg %p52
        $region22: #{tpu_custom_call.1} parent=19 // pred_check_branch
          %207 = sbr.rel (%p205) target = $region24
        $region23: #{tpu_custom_call.1} parent=19 // pred_region
          %s208 = sand.u32 %s42, 1
          %s209 = scalar_lea.sflag [#allocation5], %s208
          %s210 = sand.u32 %s42, 1
          %s211 = smul.addr %s210, 32
          %s212 = scalar_lea.vmem [#allocation4], %s211
          %s213 = smul.u32 4, %s27
          %s215 = ssub.s32 512, 512
          %216 = vsyncadd %s209, %s215
          %s217 = smul.addr %s213, 128
          %s218 = scalar_lea.hbm %s0, %s217
          %s219 = sshll.u32 %s212, 4
          %s220 = int_to_ptr.vmem [resolvable:$true] %s219
          %225 = dma.hbm_to_vmem [thread:$0]  %s218, 512, %s220, %s209, 128, 128, 8
        $region24: #{tpu_custom_call.1} parent=19 // pred_fallthru
          _
        // Predicated region
        $region25: #{tpu_custom_call.1} parent=19 // pred_check
          %p226 = pneg %p78
        $region26: #{tpu_custom_call.1} parent=19 // pred_check_branch
          %228 = sbr.rel (%p226) target = $region28
        $region27: #{tpu_custom_call.1} parent=19 // pred_region
          %s229 = sand.u32 %s20, 1
          %s230 = scalar_lea.sflag [#allocation8], %s229
          %s231 = sand.u32 %s68, 1
          %s232 = smul.addr %s231, 128
          %s233 = scalar_lea.vmem [#allocation7], %s232
          %s234 = smul.u32 2, %s28
          %s236 = ssub.s32 2048, 2048
          %237 = vsyncadd %s230, %s236
          %s238 = smul.addr %s234, 64
          %s239 = scalar_lea.hbm %s1, %s238
          %s240 = sshll.u32 %s233, 4
          %s241 = int_to_ptr.vmem [resolvable:$true] %s240
          %246 = dma.hbm_to_vmem [thread:$0]  %s239, 2048, %s241, %s230, 256, 128, 8
        $region28: #{tpu_custom_call.1} parent=19 // pred_fallthru
          _
        // Predicated region
        $region29: #{tpu_custom_call.1} parent=19 // pred_check
          %p247 = pneg %p104
        $region30: #{tpu_custom_call.1} parent=19 // pred_check_branch
          %249 = sbr.rel (%p247) target = $region32
        $region31: #{tpu_custom_call.1} parent=19 // pred_region
          %s250 = smul.u32 2, %s28
          %p251 = scmp.lt.s32.totalorder %s250, 3
          %s252 = scalar_select %p251, %s250, 3
          %s253 = scalar_lea.vmem %s2, %s252
          %s254 = smul.u32 2, %s28
        $region32: #{tpu_custom_call.1} parent=19 // pred_fallthru
          _
        // Predicated region
        $region33: #{tpu_custom_call.1} parent=19 // pred_check
          %p255 = pneg %p130
        $region34: #{tpu_custom_call.1} parent=19 // pred_check_branch
          %257 = sbr.rel (%p255) target = $region36
        $region35: #{tpu_custom_call.1} parent=19 // pred_region
          %s258 = sand.u32 %s20, 1
          %s259 = scalar_lea.sflag [#allocation8], %s258
          %s260 = sand.u32 %s120, 1
          %s261 = smul.addr %s260, 128
          %s262 = scalar_lea.vmem [#allocation9], %s261
          %s263 = smul.u32 32, %s28
          %s265 = ssub.s32 2048, 2048
          %266 = vsyncadd %s259, %s265
          %s267 = smul.addr %s263, 64
          %s268 = scalar_lea.hbm %s3, %s267
          %s269 = sshll.u32 %s262, 4
          %s270 = int_to_ptr.vmem [resolvable:$true] %s269
          %275 = dma.hbm_to_vmem [thread:$0]  %s268, 2048, %s270, %s259, 64, 64, 4
        $region36: #{tpu_custom_call.1} parent=19 // pred_fallthru
          _
      $region20: #{tpu_custom_call.1} parent=5 // pred_fallthru
        _
      %p276 = scmp.le.s32.totalorder 1, %s20
      %p277 = scmp.lt.s32.totalorder %s20, 5
      %p278 = pnand %p276, %p277
      %p279 = pneg %p278
      // Predicated region
      $region37: #{tpu_custom_call.1} parent=5 // pred_check
        _
      $region38: #{tpu_custom_call.1} parent=5 // pred_check_branch
        %281 = sbr.rel (%p278) target = $region40
      $region39: #{tpu_custom_call.1} parent=5 // pred_region
        %s282 = ssub.s32 %s20, 1
        %s283 = sand.u32 %s45, 1
        %s284 = scalar_lea.sflag [#allocation5], %s283
        %s285 = sand.u32 %s45, 1
        %s286 = smul.addr %s285, 32
        %s287 = scalar_lea.vmem [#allocation4], %s286
        // Predicated region
        $region41: #{tpu_custom_call.1} parent=39 // pred_check
          %p288 = pneg %p58
        $region42: #{tpu_custom_call.1} parent=39 // pred_check_branch
          %290 = sbr.rel (%p288) target = $region44
        $region43: #{tpu_custom_call.1} parent=39 // pred_region
          %291 = dma.done %s284, 512
        $region44: #{tpu_custom_call.1} parent=39 // pred_fallthru
          _
        %s292 = sand.u32 %s25, 1
        %s293 = scalar_lea.sflag [#allocation8], %s292
        %s294 = sand.u32 %s71, 1
        %s295 = smul.addr %s294, 128
        %s296 = scalar_lea.vmem [#allocation7], %s295
        // Predicated region
        $region45: #{tpu_custom_call.1} parent=39 // pred_check
          %p297 = pneg %p84
        $region46: #{tpu_custom_call.1} parent=39 // pred_check_branch
          %299 = sbr.rel (%p297) target = $region48
        $region47: #{tpu_custom_call.1} parent=39 // pred_region
          %300 = dma.done %s293, 2048
        $region48: #{tpu_custom_call.1} parent=39 // pred_fallthru
          _
        %s301 = sand.u32 %s25, 1
        %s302 = scalar_lea.sflag [#allocation8], %s301
        %s303 = sand.u32 %s123, 1
        %s304 = smul.addr %s303, 128
        %s305 = scalar_lea.vmem [#allocation9], %s304
        // Predicated region
        $region49: #{tpu_custom_call.1} parent=39 // pred_check
          %p306 = pneg %p136
        $region50: #{tpu_custom_call.1} parent=39 // pred_check_branch
          %308 = sbr.rel (%p306) target = $region52
        $region51: #{tpu_custom_call.1} parent=39 // pred_region
          %309 = dma.done %s302, 2048
        $region52: #{tpu_custom_call.1} parent=39 // pred_fallthru
          _
        %s310 = sand.u32 %s45, 1
        %s311 = scalar_lea.sflag [#allocation5], %s310
        %s312 = sand.u32 %s45, 1
        %s313 = smul.addr %s312, 32
        %s314 = scalar_lea.vmem [#allocation4], %s313
        %p315 = pneg %p58
        %p316 = pneg %p55
        %s317 = sand.u32 %s25, 1
        %s318 = scalar_lea.sflag [#allocation8], %s317
        %s319 = sand.u32 %s71, 1
        %s320 = smul.addr %s319, 128
        %s321 = scalar_lea.vmem [#allocation7], %s320
        %p322 = pneg %p84
        %p323 = pneg %p81
        %s324 = smul.u32 2, %s30
        %p325 = scmp.lt.s32.totalorder %s324, 3
        %s326 = scalar_select %p325, %s324, 3
        %s327 = scalar_lea.vmem %s2, %s326
        %p328 = pneg %p110
        %p329 = pneg %p107
        %s330 = sand.u32 %s25, 1
        %s331 = scalar_lea.sflag [#allocation8], %s330
        %s332 = sand.u32 %s123, 1
        %s333 = smul.addr %s332, 128
        %s334 = scalar_lea.vmem [#allocation9], %s333
        %p335 = pneg %p136
        %p336 = pneg %p133
        %p337 = pneg %p157
        %p338 = pneg %p154
        %p339 = pneg %p183
        %p340 = pneg %p180
        %s341 = sand.u32 %s170, 1
        %s342 = scalar_lea.sflag [#allocation6], %s341
        %s343 = sand.u32 %s170, 1
        %s344 = smul.addr %s343, 32
        %s345 = scalar_lea.vmem [#allocation10], %s344
        %s346 = smul.u32 4, %s29
        %s347 = smul.u32 2, %s30
        %s348 = smul.u32 2, %s30
        %p349 = scmp.lt.s32.totalorder %s348, 3
        %s350 = scalar_select %p349, %s348, 3
        %s351 = scalar_lea.vmem %s2, %s350
        %s352 = smul.u32 2, %s30
        %s353 = smul.u32 32, %s30
        %s354 = smul.u32 4, %s29
        %p356 = scmp.eq.s32.totalorder %s30, 0
        // Predicated region
        $region53: #{tpu_custom_call.1} parent=39 // pred_check
          %p357 = pneg %p356
        $region54: #{tpu_custom_call.1} parent=39 // pred_check_branch
          %359 = sbr.rel (%p357) target = $region56
        $region55: #{tpu_custom_call.1} parent=39 // pred_region
          %v360 = vld [vmem:[%s287] sm:$0xff]
          %v361 = vld [vmem:[%s287 + $0x8] sm:$0xff]
          %v362 = vld [vmem:[%s287 + $0x10] sm:$0xff]
          %v363 = vld [vmem:[%s287 + $0x18] sm:$0xff]
          %v364 = vpack.c.bf16 %v361, %v360
          %v365 = vpack.c.bf16 %v363, %v362
          %366 = vst [vmem:[#allocation3] sm:$0xff] %v364
          %367 = vst [vmem:[#allocation3 + $0x8] sm:$0xff] %v365
          %v368 = vld [vmem:[%s4] sm:$0x1]
          %v370 = vlaneseq
          %v371 = vshrl.u32 %v370, 7
          %v372 = vsub.s32 0, %v371
          %v373 = vrot.slane %v368, %v372
          %375 = vst [vmem:[#allocation2] sm:$0xff] %v373
          %376 = vst [vmem:[#allocation2 + $0x8] sm:$0xff] %v373
          %377 = vst [vmem:[#allocation2 + $0x10] sm:$0xff] %v373
          %378 = vst [vmem:[#allocation2 + $0x18] sm:$0xff] %v373
        $region56: #{tpu_custom_call.1} parent=39 // pred_fallthru
          _
        %v379 = vld [vmem:[#allocation3] sm:$0xff]
        %v380 = vld [vmem:[#allocation3 + $0x8] sm:$0xff]
        %v381 = vld [vmem:[%s296] sm:$0xff]
        %v382 = vld [vmem:[%s296 + $0x8] sm:$0xff]
        %v383 = vld [vmem:[%s296 + $0x10] sm:$0xff]
        %v384 = vld [vmem:[%s296 + $0x18] sm:$0xff]
        %v385 = vld [vmem:[%s296 + $0x20] sm:$0xff]
        %v386 = vld [vmem:[%s296 + $0x28] sm:$0xff]
        %v387 = vld [vmem:[%s296 + $0x30] sm:$0xff]
        %v388 = vld [vmem:[%s296 + $0x38] sm:$0xff]
        %v389 = vld [vmem:[%s296 + $0x40] sm:$0xff]
        %v390 = vld [vmem:[%s296 + $0x48] sm:$0xff]
        %v391 = vld [vmem:[%s296 + $0x50] sm:$0xff]
        %v392 = vld [vmem:[%s296 + $0x58] sm:$0xff]
        %v393 = vld [vmem:[%s296 + $0x60] sm:$0xff]
        %v394 = vld [vmem:[%s296 + $0x68] sm:$0xff]
        %v395 = vld [vmem:[%s296 + $0x70] sm:$0xff]
        %v396 = vld [vmem:[%s296 + $0x78] sm:$0xff]
        %v397 = vld [vmem:[%s351] sm:$0x3]
        %v399 = vlaneseq
        %v400 = vshrl.u32 %v399, 7
        %v401 = vsub.s32 0, %v400
        %v402 = vrot.slane %v397, %v401
        %v403 = vlaneseq
        %v404 = vshrl.u32 %v403, 7
        %v405 = vsub.s32 1, %v404
        %v406 = vrot.slane %v397, %v405
        %v425 = vunpack.c.l.b16 %v381
        %v426 = vunpack.c.h.b16 %v381
        %v427 = vunpack.c.l.b16 %v382
        %v428 = vunpack.c.h.b16 %v382
        %v429 = vunpack.c.l.b16 %v383
        %v430 = vunpack.c.h.b16 %v383
        %v431 = vunpack.c.l.b16 %v384
        %v432 = vunpack.c.h.b16 %v384
        %v433 = vunpack.c.l.b16 %v385
        %v434 = vunpack.c.h.b16 %v385
        %v435 = vunpack.c.l.b16 %v386
        %v436 = vunpack.c.h.b16 %v386
        %v437 = vunpack.c.l.b16 %v387
        %v438 = vunpack.c.h.b16 %v387
        %v439 = vunpack.c.l.b16 %v388
        %v440 = vunpack.c.h.b16 %v388
        %v441 = vunpack.c.l.b16 %v389
        %v442 = vunpack.c.h.b16 %v389
        %v443 = vunpack.c.l.b16 %v390
        %v444 = vunpack.c.h.b16 %v390
        %v445 = vunpack.c.l.b16 %v391
        %v446 = vunpack.c.h.b16 %v391
        %v447 = vunpack.c.l.b16 %v392
        %v448 = vunpack.c.h.b16 %v392
        %v449 = vunpack.c.l.b16 %v393
        %v450 = vunpack.c.h.b16 %v393
        %v451 = vunpack.c.l.b16 %v394
        %v452 = vunpack.c.h.b16 %v394
        %v453 = vunpack.c.l.b16 %v395
        %v454 = vunpack.c.h.b16 %v395
        %v455 = vunpack.c.l.b16 %v396
        %v456 = vunpack.c.h.b16 %v396
        %v457 = vpack.c.b16 %v427, %v425
        %v458 = vpack.c.b16 %v428, %v426
        %v459 = vpack.c.b16 %v431, %v429
        %v460 = vpack.c.b16 %v432, %v430
        %v461 = vpack.c.b16 %v435, %v433
        %v462 = vpack.c.b16 %v436, %v434
        %v463 = vpack.c.b16 %v439, %v437
        %v464 = vpack.c.b16 %v440, %v438
        %v465 = vpack.c.b16 %v443, %v441
        %v466 = vpack.c.b16 %v444, %v442
        %v467 = vpack.c.b16 %v447, %v445
        %v468 = vpack.c.b16 %v448, %v446
        %v469 = vpack.c.b16 %v451, %v449
        %v470 = vpack.c.b16 %v452, %v450
        %v471 = vpack.c.b16 %v455, %v453
        %v472 = vpack.c.b16 %v456, %v454
        %489 = vmatprep.subr.bf16.mxu0 %v458
        %490 = vmatpush1.bf16.msra.mxu0 %v457
        %491 = vmatprep.subr.bf16.mxu0 %v460
        %492 = vmatpush1.bf16.msra.mxu0 %v459
        %493 = vmatprep.subr.bf16.mxu0 %v462
        %494 = vmatpush1.bf16.msra.mxu0 %v461
        %495 = vmatprep.subr.bf16.mxu0 %v464
        %496 = vmatpush1.bf16.msra.mxu0 %v463
        %497 = vmatprep.subr.bf16.mxu0 %v466
        %498 = vmatpush1.bf16.msra.mxu0 %v465
        %499 = vmatprep.subr.bf16.mxu0 %v468
        %500 = vmatpush1.bf16.msra.mxu0 %v467
        %501 = vmatprep.subr.bf16.mxu0 %v470
        %502 = vmatpush1.bf16.msra.mxu0 %v469
        %503 = vmatprep.subr.bf16.mxu0 %v472
        %504 = vmatpush1.bf16.msra.mxu0 %v471
        %505 = vmatprep.subr.bf16.mxu0 0
        %506 = vmatpush1.bf16.msra.mxu0 0
        %507 = vmatprep.subr.bf16.mxu0 0
        %508 = vmatpush1.bf16.msra.mxu0 0
        %509 = vmatprep.subr.bf16.mxu0 0
        %510 = vmatpush1.bf16.msra.mxu0 0
        %511 = vmatprep.subr.bf16.mxu0 0
        %512 = vmatpush1.bf16.msra.mxu0 0
        %513 = vmatprep.subr.bf16.mxu0 0
        %514 = vmatpush1.bf16.msra.mxu0 0
        %515 = vmatprep.subr.bf16.mxu0 0
        %516 = vmatpush1.bf16.msra.mxu0 0
        %517 = vmatprep.subr.bf16.mxu0 0
        %518 = vmatpush1.bf16.msra.mxu0 0
        %519 = vmatprep.subr.bf16.mxu0 0
        %520 = vmatpush1.bf16.msra.mxu0 0
        %521 = vmatprep.mubr.bf16.mxu0 0
        %522 = vmatmul.mubr.bf16.gmra.mrb[0].mxu0 %v379
        %v523 = vpop.f32.mrb[0].mxu0
        %v524 = vadd.f32 %v402, %v523
        %v525 = vpop.f32.mrb[0].mxu0
        %v526 = vadd.f32 %v406, %v525
        %v527 = vpop.f32.mrb[0].mxu0
        %v528 = vadd.f32 %v402, %v527
        %v529 = vpop.f32.mrb[0].mxu0
        %v530 = vadd.f32 %v406, %v529
        %531 = vmatprep.mubr.bf16.mxu0 0
        %532 = vmatmul.mubr.bf16.gmra.mrb[0].mxu0 %v380
        %v533 = vpop.f32.mrb[0].mxu0
        %v534 = vadd.f32 %v402, %v533
        %v535 = vpop.f32.mrb[0].mxu0
        %v536 = vadd.f32 %v406, %v535
        %v537 = vpop.f32.mrb[0].mxu0
        %v538 = vadd.f32 %v402, %v537
        %v539 = vpop.f32.mrb[0].mxu0
        %v540 = vadd.f32 %v406, %v539
        %541 = vdwg.mxu0
        %v542 = vmax.f32 %v524, 0.0
        %v543 = vmax.f32 %v526, 0.0
        %v544 = vmax.f32 %v528, 0.0
        %v545 = vmax.f32 %v530, 0.0
        %v546 = vmax.f32 %v534, 0.0
        %v547 = vmax.f32 %v536, 0.0
        %v548 = vmax.f32 %v538, 0.0
        %v549 = vmax.f32 %v540, 0.0
        %v550 = vld [vmem:[#allocation2] sm:$0xff]
        %v551 = vld [vmem:[#allocation2 + $0x8] sm:$0xff]
        %v552 = vld [vmem:[#allocation2 + $0x10] sm:$0xff]
        %v553 = vld [vmem:[#allocation2 + $0x18] sm:$0xff]
        %v554 = vpack.c.bf16 %v544, %v542
        %v555 = vpack.c.bf16 %v545, %v543
        %v556 = vpack.c.bf16 %v548, %v546
        %v557 = vpack.c.bf16 %v549, %v547
        %v558 = vld [vmem:[%s305] sm:$0xf]
        %v559 = vld [vmem:[%s305 + $0x4] sm:$0xf]
        %v560 = vld [vmem:[%s305 + $0x8] sm:$0xf]
        %v561 = vld [vmem:[%s305 + $0xc] sm:$0xf]
        %v562 = vld [vmem:[%s305 + $0x10] sm:$0xf]
        %v563 = vld [vmem:[%s305 + $0x14] sm:$0xf]
        %v564 = vld [vmem:[%s305 + $0x18] sm:$0xf]
        %v565 = vld [vmem:[%s305 + $0x1c] sm:$0xf]
        %v566 = vld [vmem:[%s305 + $0x20] sm:$0xf]
        %v567 = vld [vmem:[%s305 + $0x24] sm:$0xf]
        %v568 = vld [vmem:[%s305 + $0x28] sm:$0xf]
        %v569 = vld [vmem:[%s305 + $0x2c] sm:$0xf]
        %v570 = vld [vmem:[%s305 + $0x30] sm:$0xf]
        %v571 = vld [vmem:[%s305 + $0x34] sm:$0xf]
        %v572 = vld [vmem:[%s305 + $0x38] sm:$0xf]
        %v573 = vld [vmem:[%s305 + $0x3c] sm:$0xf]
        %v574 = vld [vmem:[%s305 + $0x40] sm:$0xf]
        %v575 = vld [vmem:[%s305 + $0x44] sm:$0xf]
        %v576 = vld [vmem:[%s305 + $0x48] sm:$0xf]
        %v577 = vld [vmem:[%s305 + $0x4c] sm:$0xf]
        %v578 = vld [vmem:[%s305 + $0x50] sm:$0xf]
        %v579 = vld [vmem:[%s305 + $0x54] sm:$0xf]
        %v580 = vld [vmem:[%s305 + $0x58] sm:$0xf]
        %v581 = vld [vmem:[%s305 + $0x5c] sm:$0xf]
        %v582 = vld [vmem:[%s305 + $0x60] sm:$0xf]
        %v583 = vld [vmem:[%s305 + $0x64] sm:$0xf]
        %v584 = vld [vmem:[%s305 + $0x68] sm:$0xf]
        %v585 = vld [vmem:[%s305 + $0x6c] sm:$0xf]
        %v586 = vld [vmem:[%s305 + $0x70] sm:$0xf]
        %v587 = vld [vmem:[%s305 + $0x74] sm:$0xf]
        %v588 = vld [vmem:[%s305 + $0x78] sm:$0xf]
        %v589 = vld [vmem:[%s305 + $0x7c] sm:$0xf]
        %v622 = vunpack.c.l.b16 %v558
        %v623 = vunpack.c.l.b16 %v559
        %v624 = vunpack.c.l.b16 %v560
        %v625 = vunpack.c.l.b16 %v561
        %v626 = vunpack.c.l.b16 %v562
        %v627 = vunpack.c.l.b16 %v563
        %v628 = vunpack.c.l.b16 %v564
        %v629 = vunpack.c.l.b16 %v565
        %v630 = vunpack.c.l.b16 %v566
        %v631 = vunpack.c.l.b16 %v567
        %v632 = vunpack.c.l.b16 %v568
        %v633 = vunpack.c.l.b16 %v569
        %v634 = vunpack.c.l.b16 %v570
        %v635 = vunpack.c.l.b16 %v571
        %v636 = vunpack.c.l.b16 %v572
        %v637 = vunpack.c.l.b16 %v573
        %v638 = vunpack.c.l.b16 %v574
        %v639 = vunpack.c.l.b16 %v575
        %v640 = vunpack.c.l.b16 %v576
        %v641 = vunpack.c.l.b16 %v577
        %v642 = vunpack.c.l.b16 %v578
        %v643 = vunpack.c.l.b16 %v579
        %v644 = vunpack.c.l.b16 %v580
        %v645 = vunpack.c.l.b16 %v581
        %v646 = vunpack.c.l.b16 %v582
        %v647 = vunpack.c.l.b16 %v583
        %v648 = vunpack.c.l.b16 %v584
        %v649 = vunpack.c.l.b16 %v585
        %v650 = vunpack.c.l.b16 %v586
        %v651 = vunpack.c.l.b16 %v587
        %v652 = vunpack.c.l.b16 %v588
        %v653 = vunpack.c.l.b16 %v589
        %v654 = vpack.c.b16 %v623, %v622
        %v655 = vpack.c.b16 %v625, %v624
        %v656 = vpack.c.b16 %v627, %v626
        %v657 = vpack.c.b16 %v629, %v628
        %v658 = vpack.c.b16 %v631, %v630
        %v659 = vpack.c.b16 %v633, %v632
        %v660 = vpack.c.b16 %v635, %v634
        %v661 = vpack.c.b16 %v637, %v636
        %v662 = vpack.c.b16 %v639, %v638
        %v663 = vpack.c.b16 %v641, %v640
        %v664 = vpack.c.b16 %v643, %v642
        %v665 = vpack.c.b16 %v645, %v644
        %v666 = vpack.c.b16 %v647, %v646
        %v667 = vpack.c.b16 %v649, %v648
        %v668 = vpack.c.b16 %v651, %v650
        %v669 = vpack.c.b16 %v653, %v652
        %686 = vmatprep.subr.bf16.mxu0 0
        %687 = vmatpush1.bf16.msra.mxu0 %v654
        %688 = vmatprep.subr.bf16.mxu0 0
        %689 = vmatpush1.bf16.msra.mxu0 %v655
        %690 = vmatprep.subr.bf16.mxu0 0
        %691 = vmatpush1.bf16.msra.mxu0 %v656
        %692 = vmatprep.subr.bf16.mxu0 0
        %693 = vmatpush1.bf16.msra.mxu0 %v657
        %694 = vmatprep.subr.bf16.mxu0 0
        %695 = vmatpush1.bf16.msra.mxu0 %v658
        %696 = vmatprep.subr.bf16.mxu0 0
        %697 = vmatpush1.bf16.msra.mxu0 %v659
        %698 = vmatprep.subr.bf16.mxu0 0
        %699 = vmatpush1.bf16.msra.mxu0 %v660
        %700 = vmatprep.subr.bf16.mxu0 0
        %701 = vmatpush1.bf16.msra.mxu0 %v661
        %702 = vmatprep.subr.bf16.mxu0 0
        %703 = vmatpush1.bf16.msra.mxu0 %v662
        %704 = vmatprep.subr.bf16.mxu0 0
        %705 = vmatpush1.bf16.msra.mxu0 %v663
        %706 = vmatprep.subr.bf16.mxu0 0
        %707 = vmatpush1.bf16.msra.mxu0 %v664
        %708 = vmatprep.subr.bf16.mxu0 0
        %709 = vmatpush1.bf16.msra.mxu0 %v665
        %710 = vmatprep.subr.bf16.mxu0 0
        %711 = vmatpush1.bf16.msra.mxu0 %v666
        %712 = vmatprep.subr.bf16.mxu0 0
        %713 = vmatpush1.bf16.msra.mxu0 %v667
        %714 = vmatprep.subr.bf16.mxu0 0
        %715 = vmatpush1.bf16.msra.mxu0 %v668
        %716 = vmatprep.subr.bf16.mxu0 0
        %717 = vmatpush1.bf16.msra.mxu0 %v669
        %718 = vmatprep.mubr.bf16.mxu0 %v555
        %719 = vmatmul.mubr.bf16.gmra.mrb[0].mxu0 %v554
        %v720 = vpop.f32.mrb[0].mxu0
        %v721 = vadd.f32 0.0, %v720
        %v722 = vpop.f32.mrb[0].mxu0
        %v723 = vpop.f32.mrb[0].mxu0
        %v724 = vadd.f32 0.0, %v723
        %v725 = vpop.f32.mrb[0].mxu0
        %726 = vmatprep.mubr.bf16.mxu0 %v557
        %727 = vmatmul.mubr.bf16.gmra.mrb[0].mxu0 %v556
        %v728 = vpop.f32.mrb[0].mxu0
        %v729 = vadd.f32 0.0, %v728
        %v730 = vpop.f32.mrb[0].mxu0
        %v731 = vpop.f32.mrb[0].mxu0
        %v732 = vadd.f32 0.0, %v731
        %v733 = vpop.f32.mrb[0].mxu0
        %734 = vdwg.mxu0
        %v735 = vadd.f32 %v550, %v721
        %v736 = vadd.f32 %v551, %v724
        %v737 = vadd.f32 %v552, %v729
        %v738 = vadd.f32 %v553, %v732
        %739 = vst [vmem:[#allocation2] sm:$0xff] %v735
        %740 = vst [vmem:[#allocation2 + $0x8] sm:$0xff] %v736
        %741 = vst [vmem:[#allocation2 + $0x10] sm:$0xff] %v737
        %742 = vst [vmem:[#allocation2 + $0x18] sm:$0xff] %v738
        %p743 = scmp.eq.s32.totalorder %s30, 1
        // Predicated region
        $region57: #{tpu_custom_call.1} parent=39 // pred_check
          %p744 = pneg %p743
        $region58: #{tpu_custom_call.1} parent=39 // pred_check_branch
          %746 = sbr.rel (%p744) target = $region60
        $region59: #{tpu_custom_call.1} parent=39 // pred_region
          %v747 = vld [vmem:[#allocation2] sm:$0xff]
          %v748 = vld [vmem:[#allocation2 + $0x8] sm:$0xff]
          %v749 = vld [vmem:[#allocation2 + $0x10] sm:$0xff]
          %v750 = vld [vmem:[#allocation2 + $0x18] sm:$0xff]
          %751 = vst [vmem:[%s345] sm:$0xff] %v747
          %752 = vst [vmem:[%s345 + $0x8] sm:$0xff] %v748
          %753 = vst [vmem:[%s345 + $0x10] sm:$0xff] %v749
          %754 = vst [vmem:[%s345 + $0x18] sm:$0xff] %v750
        $region60: #{tpu_custom_call.1} parent=39 // pred_fallthru
          _
        %s755 = sand.u32 %s170, 1
        %s756 = scalar_lea.sflag [#allocation6], %s755
        %s757 = sand.u32 %s170, 1
        %s758 = smul.addr %s757, 32
        %s759 = scalar_lea.vmem [#allocation10], %s758
        // Predicated region
        $region61: #{tpu_custom_call.1} parent=39 // pred_check
          %p760 = pneg %p180
        $region62: #{tpu_custom_call.1} parent=39 // pred_check_branch
          %762 = sbr.rel (%p760) target = $region64
        $region63: #{tpu_custom_call.1} parent=39 // pred_region
          %s763 = smul.u32 4, %s29
          %s765 = ssub.s32 512, 512
          %766 = vsyncadd %s756, %s765
          %s767 = smul.addr %s763, 128
          %s768 = scalar_lea.hbm %s5, %s767
          %s769 = sshll.u32 %s759, 4
          %s770 = int_to_ptr.vmem [resolvable:$true] %s769
          %775 = dma.vmem_to_hbm [thread:$0]  %s770, 512, %s768, %s756, 128, 128, 8
        $region64: #{tpu_custom_call.1} parent=39 // pred_fallthru
          _
      $region40: #{tpu_custom_call.1} parent=5 // pred_fallthru
        _
      %p776 = scmp.le.s32.totalorder 2, %s20
      // Predicated region
      $region65: #{tpu_custom_call.1} parent=5 // pred_check
        %p777 = pneg %p776
      $region66: #{tpu_custom_call.1} parent=5 // pred_check_branch
        %779 = sbr.rel (%p777) target = $region68
      $region67: #{tpu_custom_call.1} parent=5 // pred_region
        %s780 = ssub.s32 %s20, 2
        // Predicated region
        $region69: #{tpu_custom_call.1} parent=67 // pred_check
          %p781 = pneg %p186
        $region70: #{tpu_custom_call.1} parent=67 // pred_check_branch
          %783 = sbr.rel (%p781) target = $region72
        $region71: #{tpu_custom_call.1} parent=67 // pred_region
          %s784 = sand.u32 %s171, 1
          %s785 = scalar_lea.sflag [#allocation6], %s784
          %s786 = sand.u32 %s171, 1
          %s787 = smul.addr %s786, 32
          %s788 = scalar_lea.vmem [#allocation10], %s787
          %789 = dma.done %s785, 512
        $region72: #{tpu_custom_call.1} parent=67 // pred_fallthru
          _
      $region68: #{tpu_custom_call.1} parent=5 // pred_fallthru
        _
    $region6: #{tpu_custom_call.1} parent=1 // loop_footer
      %s24 = sadd.s32 1, %s20
    $region7: #{tpu_custom_call.1} parent=1 // loop_footer_branch
      %19 = sbr.rel target = $region3
    $region8: #{tpu_custom_call.1} parent=1 // loop_exit
      _
    %790 = vsyncpa [#allocation5], 1
    %s791 = scalar_lea.sflag [#allocation5], 1
    %792 = vsyncpa %s791, 1
    %793 = vsyncpa [#allocation8], 1
    %s794 = scalar_lea.sflag [#allocation8], 1
    %795 = vsyncpa %s794, 1
    %796 = vsyncpa [#allocation6], 1
    %s797 = scalar_lea.sflag [#allocation6], 1
    %798 = vsyncpa %s797, 1

</llo_original>
